<compile_context>
chip_gen: v6e
topology: v6e:2x2x1
jax: 0.10.0
libtpu: 0.0.40
codegen_flags: <defaults>
</compile_context>

<pallas_src>
import jax
import jax.numpy as jnp
import numpy as np
from jax.experimental import pallas as pl
from jax.experimental.pallas import tpu as pltpu

INPUT_SIZE = 2
HIDDEN = 16
TIMESTEPS = 100


def swiss_roll_kernel(x_ref, cond_ref, c1_ref, c1n_ref, s1_ref,
                      c2_ref, c2n_ref, s2_ref, out_ref):
    """Whole forward pass, lane-dense (batch on lanes).

    x_ref:    (IN,  Bt)  f32   inputs, transposed
    cond_ref: (HID, Bt)  f32   embedding(t), transposed (gathered in wrapper)
    c1_ref:   (HID, IN)  f32   layer-1 centres
    c1n_ref:  (HID, 1)   f32   ||c1_j||^2
    s1_ref:   (HID, 1)   f32   exp(-2 * log_sigma1)
    c2_ref:   (OUT, HID) f32   output-layer centres
    c2n_ref:  (OUT, 1)   f32   ||c2_j||^2
    s2_ref:   (OUT, 1)   f32   exp(-2 * log_sigma2)
    out_ref:  (OUT, Bt)  f32
    """
    x = x_ref[...]                                                     # (IN, Bt)

    # ---- first RBF layer via ||x-c||^2 = ||x||^2 - 2 c.x + ||c||^2 ----
    xn = jnp.sum(x * x, axis=0, keepdims=True)                         # (1, Bt)
    cx = jnp.dot(c1_ref[...], x,
                 preferred_element_type=jnp.float32,
                 precision=jax.lax.Precision.HIGHEST)                  # (HID, Bt)
    sq1 = jnp.maximum(xn - 2.0 * cx + c1n_ref[...], 0.0)               # clamp cancellation
    h = jnp.exp(-sq1 * s1_ref[...])                                    # gaussian basis

    # ---- temporal conditioning: elementwise multiply by pre-gathered embedding ----
    z = cond_ref[...] * h                                              # (HID, Bt)

    # ---- output RBF layer ----
    zn = jnp.sum(z * z, axis=0, keepdims=True)                         # (1, Bt)
    cz = jnp.dot(c2_ref[...], z,
                 preferred_element_type=jnp.float32,
                 precision=jax.lax.Precision.HIGHEST)                  # (OUT, Bt)
    sq2 = jnp.maximum(zn - 2.0 * cz + c2n_ref[...], 0.0)
    out_ref[...] = jnp.exp(-sq2 * s2_ref[...])


def _pick_batch_tile(bp):
    """Lane-axis batch tile for a 128-padded batch `bp`.

    Per-tile VMEM footprint is tiny (even Bt=8192 is well under 1 MiB of
    double-buffered I/O), so pick the biggest tile that still leaves a grid of
    length >= 2 so v7x's two TensorCores both get work; tiny batches run as a
    single full-extent block."""
    for cand in (8192, 4096, 2048, 1024, 512, 256, 128):
        if bp % cand == 0 and bp // cand >= 2:
            return cand
    return bp


def swiss_roll_forward(x, t, params):
    """Wrapper: embedding gather + layout transposes + batch padding + one pallas_call."""
    emb = params["embedding"]       # (T, HID)
    c1 = params["c1"]               # (HID, IN)
    ls1 = params["ls1"]             # (HID,)
    c2 = params["c2"]               # (OUT, HID)
    ls2 = params["ls2"]             # (OUT,)

    b = x.shape[0]
    hid, in_sz = c1.shape
    out_sz = c2.shape[0]

    # nn.Embedding gather done here (tiny table, plain XLA gather; exact numerics).
    cond = emb.astype(jnp.float32)[t]                    # (B, HID)

    # lane-dense layout: batch on the lane axis; pad B to a multiple of 128 so
    # every store in the kernel is an unmasked lane-dense vst.
    bp = ((b + 127) // 128) * 128
    pad = bp - b
    x_t = x.T.astype(jnp.float32)                        # (IN, B)
    cond_t = cond.T                                      # (HID, B)
    if pad:
        x_t = jnp.pad(x_t, ((0, 0), (0, pad)))
        cond_t = jnp.pad(cond_t, ((0, 0), (0, pad)))

    c1f = c1.astype(jnp.float32)
    c2f = c2.astype(jnp.float32)
    c1n = jnp.sum(c1f * c1f, axis=1, keepdims=True)      # (HID, 1)
    c2n = jnp.sum(c2f * c2f, axis=1, keepdims=True)      # (OUT, 1)
    s1 = jnp.exp(-2.0 * ls1.astype(jnp.float32)).reshape(hid, 1)
    s2 = jnp.exp(-2.0 * ls2.astype(jnp.float32)).reshape(out_sz, 1)

    bt = _pick_batch_tile(bp)
    grid = (bp // bt,)

    def batched(rows):
        return pl.BlockSpec((rows, bt), lambda i: (0, i))

    def resident(shape):
        n = len(shape)
        return pl.BlockSpec(shape, lambda i, _n=n: (0,) * _n)

    out_t = pl.pallas_call(
        swiss_roll_kernel,
        out_shape=jax.ShapeDtypeStruct((out_sz, bp), jnp.float32),
        grid=grid,
        in_specs=[
            batched(in_sz),            # x^T           (IN, Bt)
            batched(hid),              # embedding(t)^T (HID, Bt)
            resident((hid, in_sz)),    # c1            (HID, IN)
            resident((hid, 1)),        # ||c1||^2
            resident((hid, 1)),        # exp(-2 ls1)
            resident((out_sz, hid)),   # c2            (OUT, HID)
            resident((out_sz, 1)),     # ||c2||^2
            resident((out_sz, 1)),     # exp(-2 ls2)
        ],
        out_specs=batched(out_sz),     # out^T         (OUT, Bt)
        compiler_params=pltpu.CompilerParams(
            dimension_semantics=("parallel",)),
    )(x_t, cond_t, c1f, c1n, s1, c2f, c2n, s2)

    return out_t[:, :b].T                                # (B, OUT)


def reference(x, t, params):
    """Pure-JAX reference mirroring the PyTorch forward (sqrt/div/exp chain)."""
    def rbf(inp, centres, log_sigmas):
        diff = inp[:, None, :] - centres[None, :, :]
        d = jnp.sqrt(jnp.sum(diff * diff, axis=-1)) / jnp.exp(log_sigmas)[None, :]
        return jnp.exp(-(d * d))

    h = rbf(x, params["c1"], params["ls1"])
    cond = params["embedding"][t]
    return rbf(cond * h, params["c2"], params["ls2"])


if __name__ == "__main__":
    key = jax.random.PRNGKey(0)
    k_x, k_t, k_c1, k_c2, k_emb = jax.random.split(key, 5)

    B = 8
    x = jax.random.normal(k_x, (B, INPUT_SIZE), dtype=jnp.float32)
    t = jax.random.randint(k_t, (B,), 0, TIMESTEPS, dtype=jnp.int32)

    # Deterministic synthetic parameters matching the PyTorch init:
    #   RBF centres ~ N(0,1), log_sigmas = 0, embedding.weight ~ U[0,1)
    params = {
        "c1": jax.random.normal(k_c1, (HIDDEN, INPUT_SIZE), dtype=jnp.float32),
        "ls1": jnp.zeros((HIDDEN,), jnp.float32),
        "c2": jax.random.normal(k_c2, (INPUT_SIZE, HIDDEN), dtype=jnp.float32),
        "ls2": jnp.zeros((INPUT_SIZE,), jnp.float32),
        "embedding": jax.random.uniform(k_emb, (TIMESTEPS, HIDDEN), dtype=jnp.float32),
    }

    out = swiss_roll_forward(x, t, params)
    out = jax.block_until_ready(out)

    ref = reference(x, t, params)
    np.testing.assert_allclose(np.asarray(out), np.asarray(ref), rtol=1e-5, atol=1e-5)
    assert out.shape == (B, INPUT_SIZE) and out.dtype == jnp.float32

    print("KERNEL_OK")
</pallas_src>

<mosaic_0001>
module attributes {stable_mosaic.version = 11 : i64} {
  func.func @swiss_roll_kernel(%arg0: i32, %arg1: memref<2x128xf32, #tpu.memory_space<vmem>>, %arg2: memref<16x128xf32, #tpu.memory_space<vmem>>, %arg3: memref<16x2xf32, #tpu.memory_space<vmem>>, %arg4: memref<16x1xf32, #tpu.memory_space<vmem>>, %arg5: memref<16x1xf32, #tpu.memory_space<vmem>>, %arg6: memref<2x16xf32, #tpu.memory_space<vmem>>, %arg7: memref<2x1xf32, #tpu.memory_space<vmem>>, %arg8: memref<2x1xf32, #tpu.memory_space<vmem>>, %arg9: memref<2x128xf32, #tpu.memory_space<vmem>>) attributes {dimension_semantics = [#tpu.dimension_semantics<parallel>], iteration_bounds = array<i64: 1>, scalar_prefetch = 0 : i64, scratch_operands = 0 : i64, tpu.core_type = #tpu.core_type<tc>, window_params = [{transform_indices = @transform_0, window_bounds = array<i64: 2, 128>}, {transform_indices = @transform_1, window_bounds = array<i64: 16, 128>}, {pipeline_mode = #tpu.pipeline_mode<synchronous>, transform_indices = @transform_2, window_bounds = array<i64: 16, 2>}, {pipeline_mode = #tpu.pipeline_mode<synchronous>, transform_indices = @transform_3, window_bounds = array<i64: 16, 1>}, {pipeline_mode = #tpu.pipeline_mode<synchronous>, transform_indices = @transform_4, window_bounds = array<i64: 16, 1>}, {pipeline_mode = #tpu.pipeline_mode<synchronous>, transform_indices = @transform_5, window_bounds = array<i64: 2, 16>}, {pipeline_mode = #tpu.pipeline_mode<synchronous>, transform_indices = @transform_6, window_bounds = array<i64: 2, 1>}, {pipeline_mode = #tpu.pipeline_mode<synchronous>, transform_indices = @transform_7, window_bounds = array<i64: 2, 1>}, {transform_indices = @transform_8, window_bounds = array<i64: 2, 128>}]} {
    %c0 = arith.constant 0 : index
    %c0_0 = arith.constant 0 : index
    %0 = vector.load %arg1[%c0, %c0_0] : memref<2x128xf32, #tpu.memory_space<vmem>>, vector<2x128xf32>
    %1 = arith.mulf %0, %0 : vector<2x128xf32>
    %cst = arith.constant dense<0.000000e+00> : vector<128xf32>
    %2 = vector.multi_reduction <add>, %1, %cst [0] : vector<2x128xf32> to vector<128xf32>
    %3 = vector.shape_cast %2 : vector<128xf32> to vector<1x128xf32>
    %c0_1 = arith.constant 0 : index
    %c0_2 = arith.constant 0 : index
    %4 = vector.load %arg3[%c0_1, %c0_2] : memref<16x2xf32, #tpu.memory_space<vmem>>, vector<16x2xf32>
    %cst_3 = arith.constant dense<0.000000e+00> : vector<16x128xf32>
    %5 = tpu.matmul %4, %0, %cst_3 {dimension_numbers = #tpu.dot_dimension_numbers<[1], [0], [0], [1], [0, 0, 1, 1], [], []>, precision = #tpu.contract_precision<fp32>} : vector<16x2xf32>, vector<2x128xf32>, vector<16x128xf32> -> vector<16x128xf32>
    %cst_4 = arith.constant 2.000000e+00 : f32
    %6 = vector.broadcast %cst_4 : f32 to vector<16x128xf32>
    %7 = arith.mulf %6, %5 : vector<16x128xf32>
    %8 = vector.broadcast %3 : vector<1x128xf32> to vector<16x128xf32>
    %9 = arith.subf %8, %7 : vector<16x128xf32>
    %c0_5 = arith.constant 0 : index
    %c0_6 = arith.constant 0 : index
    %10 = vector.load %arg4[%c0_5, %c0_6] : memref<16x1xf32, #tpu.memory_space<vmem>>, vector<16x1xf32>
    %11 = vector.broadcast %10 : vector<16x1xf32> to vector<16x128xf32>
    %12 = arith.addf %9, %11 : vector<16x128xf32>
    %cst_7 = arith.constant 0.000000e+00 : f32
    %13 = vector.broadcast %cst_7 : f32 to vector<16x128xf32>
    %14 = arith.maximumf %12, %13 : vector<16x128xf32>
    %cst_8 = arith.constant 0.000000e+00 : f32
    %15 = vector.broadcast %cst_8 : f32 to vector<16x128xf32>
    %16 = arith.subf %15, %14 : vector<16x128xf32>
    %c0_9 = arith.constant 0 : index
    %c0_10 = arith.constant 0 : index
    %17 = vector.load %arg5[%c0_9, %c0_10] : memref<16x1xf32, #tpu.memory_space<vmem>>, vector<16x1xf32>
    %18 = vector.broadcast %17 : vector<16x1xf32> to vector<16x128xf32>
    %19 = arith.mulf %16, %18 : vector<16x128xf32>
    %20 = math.exp %19 : vector<16x128xf32>
    %c0_11 = arith.constant 0 : index
    %c0_12 = arith.constant 0 : index
    %21 = vector.load %arg2[%c0_11, %c0_12] : memref<16x128xf32, #tpu.memory_space<vmem>>, vector<16x128xf32>
    %22 = arith.mulf %21, %20 : vector<16x128xf32>
    %23 = arith.mulf %22, %22 : vector<16x128xf32>
    %cst_13 = arith.constant dense<0.000000e+00> : vector<128xf32>
    %24 = vector.multi_reduction <add>, %23, %cst_13 [0] : vector<16x128xf32> to vector<128xf32>
    %25 = vector.shape_cast %24 : vector<128xf32> to vector<1x128xf32>
    %c0_14 = arith.constant 0 : index
    %c0_15 = arith.constant 0 : index
    %26 = vector.load %arg6[%c0_14, %c0_15] : memref<2x16xf32, #tpu.memory_space<vmem>>, vector<2x16xf32>
    %cst_16 = arith.constant dense<0.000000e+00> : vector<2x128xf32>
    %27 = tpu.matmul %26, %22, %cst_16 {dimension_numbers = #tpu.dot_dimension_numbers<[1], [0], [0], [1], [0, 0, 1, 1], [], []>, precision = #tpu.contract_precision<fp32>} : vector<2x16xf32>, vector<16x128xf32>, vector<2x128xf32> -> vector<2x128xf32>
    %cst_17 = arith.constant 2.000000e+00 : f32
    %28 = vector.broadcast %cst_17 : f32 to vector<2x128xf32>
    %29 = arith.mulf %28, %27 : vector<2x128xf32>
    %30 = vector.broadcast %25 : vector<1x128xf32> to vector<2x128xf32>
    %31 = arith.subf %30, %29 : vector<2x128xf32>
    %c0_18 = arith.constant 0 : index
    %c0_19 = arith.constant 0 : index
    %32 = vector.load %arg7[%c0_18, %c0_19] : memref<2x1xf32, #tpu.memory_space<vmem>>, vector<2x1xf32>
    %33 = vector.broadcast %32 : vector<2x1xf32> to vector<2x128xf32>
    %34 = arith.addf %31, %33 : vector<2x128xf32>
    %cst_20 = arith.constant 0.000000e+00 : f32
    %35 = vector.broadcast %cst_20 : f32 to vector<2x128xf32>
    %36 = arith.maximumf %34, %35 : vector<2x128xf32>
    %cst_21 = arith.constant 0.000000e+00 : f32
    %37 = vector.broadcast %cst_21 : f32 to vector<2x128xf32>
    %38 = arith.subf %37, %36 : vector<2x128xf32>
    %c0_22 = arith.constant 0 : index
    %c0_23 = arith.constant 0 : index
    %39 = vector.load %arg8[%c0_22, %c0_23] : memref<2x1xf32, #tpu.memory_space<vmem>>, vector<2x1xf32>
    %40 = vector.broadcast %39 : vector<2x1xf32> to vector<2x128xf32>
    %41 = arith.mulf %38, %40 : vector<2x128xf32>
    %42 = math.exp %41 : vector<2x128xf32>
    %c0_24 = arith.constant 0 : index
    %c0_25 = arith.constant 0 : index
    %43 = vector.load %arg9[%c0_24, %c0_25] : memref<2x128xf32, #tpu.memory_space<vmem>>, vector<2x128xf32>
    tpu.vector_store %arg9[%c0_24, %c0_25], %42 {strides = array<i32>} : memref<2x128xf32, #tpu.memory_space<vmem>>, vector<2x128xf32>,
    return
  }
  func.func @transform_0(%arg0: i32) -> (i32, i32) {
    %c0_i32 = arith.constant 0 : i32
    %c0_i32_0 = arith.constant 0 : i32
    return %c0_i32, %arg0 : i32, i32
  }
  func.func @transform_1(%arg0: i32) -> (i32, i32) {
    %c0_i32 = arith.constant 0 : i32
    %c0_i32_0 = arith.constant 0 : i32
    return %c0_i32, %arg0 : i32, i32
  }
  func.func @transform_2(%arg0: i32) -> (i32, i32) {
    %c0_i32 = arith.constant 0 : i32
    %c0_i32_0 = arith.constant 0 : i32
    %c0_i32_1 = arith.constant 0 : i32
    return %c0_i32, %c0_i32_0 : i32, i32
  }
  func.func @transform_3(%arg0: i32) -> (i32, i32) {
    %c0_i32 = arith.constant 0 : i32
    %c0_i32_0 = arith.constant 0 : i32
    %c0_i32_1 = arith.constant 0 : i32
    return %c0_i32, %c0_i32_0 : i32, i32
  }
  func.func @transform_4(%arg0: i32) -> (i32, i32) {
    %c0_i32 = arith.constant 0 : i32
    %c0_i32_0 = arith.constant 0 : i32
    %c0_i32_1 = arith.constant 0 : i32
    return %c0_i32, %c0_i32_0 : i32, i32
  }
  func.func @transform_5(%arg0: i32) -> (i32, i32) {
    %c0_i32 = arith.constant 0 : i32
    %c0_i32_0 = arith.constant 0 : i32
    %c0_i32_1 = arith.constant 0 : i32
    return %c0_i32, %c0_i32_0 : i32, i32
  }
  func.func @transform_6(%arg0: i32) -> (i32, i32) {
    %c0_i32 = arith.constant 0 : i32
    %c0_i32_0 = arith.constant 0 : i32
    %c0_i32_1 = arith.constant 0 : i32
    return %c0_i32, %c0_i32_0 : i32, i32
  }
  func.func @transform_7(%arg0: i32) -> (i32, i32) {
    %c0_i32 = arith.constant 0 : i32
    %c0_i32_0 = arith.constant 0 : i32
    %c0_i32_1 = arith.constant 0 : i32
    return %c0_i32, %c0_i32_0 : i32, i32
  }
  func.func @transform_8(%arg0: i32) -> (i32, i32) {
    %c0_i32 = arith.constant 0 : i32
    %c0_i32_0 = arith.constant 0 : i32
    return %c0_i32, %arg0 : i32, i32
  }
}

</mosaic_0001>

<llo_original>
// kernel: tpu_custom_call.1
$region0: #{tpu_custom_call.1}
  #allocation0 [shape = 'u32[]', space=smem, size = 0x4, offset = 0x4, fixed_abs, tag = 'smem constant byte address 0x4 - core index']
  #allocation1 [shape = 'u32[144,128]{1,0:T(1,128)}', space=vmem, size = 0x12000, scoped, tag = 'internal scratch']
  %s0 = inlined_call_operand.vmem [shape: f32[2,128], index: 0, kind: input, shape index: {}]
  %s1 = inlined_call_operand.vmem [shape: f32[16,128], index: 1, kind: input, shape index: {}]
  %s2 = inlined_call_operand.vmem [shape: f32[16,2], index: 2, kind: input, shape index: {}]
  %s3 = inlined_call_operand.vmem [shape: f32[16,1], index: 3, kind: input, shape index: {}]
  %s4 = inlined_call_operand.vmem [shape: f32[16,1], index: 4, kind: input, shape index: {}]
  %s5 = inlined_call_operand.vmem [shape: f32[2,16], index: 5, kind: input, shape index: {}]
  %s6 = inlined_call_operand.vmem [shape: f32[2,1], index: 6, kind: input, shape index: {}]
  %s7 = inlined_call_operand.vmem [shape: f32[2,1], index: 7, kind: input, shape index: {}]
  %s8 = inlined_call_operand.hbm [shape: f32[2,128], index: 8, kind: output, shape index: {}]
  %s9 = sld [smem:[#allocation0]]
  $region42: #{tpu_custom_call.1} parent=0
    _
  %s11 = ssub.s32 1, %s9
  %s12 = scalar_select 0, %s11, %s9
  $region1: #{tpu_custom_call.1} parent=0
    #allocation2 [shape = 'u8[1024]{0}', space=vmem, size = 0x400, scoped, tag = 'output window, operand 0, single buffered']
    #allocation3 [shape = 's32[1]{0}', space=sflag, size = 0x4, scoped, tag = 'scoped memory for tpu_custom_call.1']
    %13 = vsyncpa [#allocation3], 0
    // Predicated region
    $region2: #{tpu_custom_call.1} parent=1 // pred_check
      _
    $region3: #{tpu_custom_call.1} parent=1 // pred_check_branch
      %15 = sbr.rel (0) target = $region5
    $region4: #{tpu_custom_call.1} parent=1 // pred_region
      _
    $region5: #{tpu_custom_call.1} parent=1 // pred_fallthru
      _
    // Predicated region
    $region6: #{tpu_custom_call.1} parent=1 // pred_check
      _
    $region7: #{tpu_custom_call.1} parent=1 // pred_check_branch
      %17 = sbr.rel (0) target = $region9
    $region8: #{tpu_custom_call.1} parent=1 // pred_region
      _
    $region9: #{tpu_custom_call.1} parent=1 // pred_fallthru
      _
    // Predicated region
    $region10: #{tpu_custom_call.1} parent=1 // pred_check
      _
    $region11: #{tpu_custom_call.1} parent=1 // pred_check_branch
      %19 = sbr.rel (0) target = $region13
    $region12: #{tpu_custom_call.1} parent=1 // pred_region
      _
    $region13: #{tpu_custom_call.1} parent=1 // pred_fallthru
      _
    // Predicated region
    $region14: #{tpu_custom_call.1} parent=1 // pred_check
      _
    $region15: #{tpu_custom_call.1} parent=1 // pred_check_branch
      %21 = sbr.rel (0) target = $region17
    $region16: #{tpu_custom_call.1} parent=1 // pred_region
      _
    $region17: #{tpu_custom_call.1} parent=1 // pred_fallthru
      _
    // Predicated region
    $region18: #{tpu_custom_call.1} parent=1 // pred_check
      _
    $region19: #{tpu_custom_call.1} parent=1 // pred_check_branch
      %23 = sbr.rel (0) target = $region21
    $region20: #{tpu_custom_call.1} parent=1 // pred_region
      _
    $region21: #{tpu_custom_call.1} parent=1 // pred_fallthru
      _
    // Predicated region
    $region22: #{tpu_custom_call.1} parent=1 // pred_check
      _
    $region23: #{tpu_custom_call.1} parent=1 // pred_check_branch
      %25 = sbr.rel (0) target = $region25
    $region24: #{tpu_custom_call.1} parent=1 // pred_region
      _
    $region25: #{tpu_custom_call.1} parent=1 // pred_fallthru
      _
    // Predicated region
    $region26: #{tpu_custom_call.1} parent=1 // pred_check
      _
    $region27: #{tpu_custom_call.1} parent=1 // pred_check_branch
      %27 = sbr.rel (0) target = $region29
    $region28: #{tpu_custom_call.1} parent=1 // pred_region
      _
    $region29: #{tpu_custom_call.1} parent=1 // pred_fallthru
      _
    // Predicated region
    $region30: #{tpu_custom_call.1} parent=1 // pred_check
      _
    $region31: #{tpu_custom_call.1} parent=1 // pred_check_branch
      %29 = sbr.rel (0) target = $region33
    $region32: #{tpu_custom_call.1} parent=1 // pred_region
      _
    $region33: #{tpu_custom_call.1} parent=1 // pred_fallthru
      _
    %v30 = vld [vmem:[%s0] sm:$0x3]
    %v31 = vmul.f32 %v30, %v30
    %vm32 = vcmask 1041408
    %v33 = vsel %vm32, %v31, 0.0
    %v34 = vrot.slane %v33, 4
    %v35 = vadd.f32 %v33, %v34
    %v36 = vrot.slane %v35, 2
    %v37 = vadd.f32 %v35, %v36
    %v38 = vrot.slane %v37, 1
    %v39 = vadd.f32 %v37, %v38
    %v40 = vld [vmem:[%s2] sm:$0xff]
    %v41 = vld [vmem:[%s2 + $0x8] sm:$0xff]
    %vm42 = vcmask 15360
    %v44 = vsel %vm42, %v40, 0
    %v47 = vsel %vm42, %v41, 0
    %v50 = vsel %vm32, %v30, 0
    %52 = vmatprep.subr.mxu0 0.0
    %53 = vmatpush1.msra.mxu0 0.0
    %54 = vmatprep.subr.mxu0 0.0
    %55 = vmatpush1.msra.mxu0 0.0
    %56 = vmatprep.subr.mxu0 0.0
    %57 = vmatpush1.msra.mxu0 0.0
    %58 = vmatprep.subr.mxu0 0.0
    %59 = vmatpush1.msra.mxu0 0.0
    %60 = vmatprep.subr.mxu0 0.0
    %61 = vmatpush1.msra.mxu0 0.0
    %62 = vmatprep.subr.mxu0 0.0
    %63 = vmatpush1.msra.mxu0 0.0
    %64 = vmatprep.subr.mxu0 0.0
    %65 = vmatpush1.msra.mxu0 0.0
    %66 = vmatprep.subr.mxu0 0.0
    %67 = vmatpush1.msra.mxu0 0.0
    %68 = vmatprep.subr.mxu0 0.0
    %69 = vmatpush1.msra.mxu0 0.0
    %70 = vmatprep.subr.mxu0 0.0
    %71 = vmatpush1.msra.mxu0 0.0
    %72 = vmatprep.subr.mxu0 0.0
    %73 = vmatpush1.msra.mxu0 0.0
    %74 = vmatprep.subr.mxu0 0.0
    %75 = vmatpush1.msra.mxu0 0.0
    %76 = vmatprep.subr.mxu0 0.0
    %77 = vmatpush1.msra.mxu0 0.0
    %78 = vmatprep.subr.mxu0 0.0
    %79 = vmatpush1.msra.mxu0 0.0
    %80 = vmatprep.subr.mxu0 0.0
    %81 = vmatpush1.msra.mxu0 0.0
    %82 = vmatprep.subr.mxu0 0.0
    %v83 = vand.u32 %v50, 4294901760
    %84 = vmatpush1.msra.mxu0 %v83
    %85 = vmatprep.subr.mxu0 0.0
    %86 = vmatpush2.msra.mxu0 0.0
    %87 = vmatprep.subr.mxu0 0.0
    %88 = vmatpush2.msra.mxu0 0.0
    %89 = vmatprep.subr.mxu0 0.0
    %90 = vmatpush2.msra.mxu0 0.0
    %91 = vmatprep.subr.mxu0 0.0
    %92 = vmatpush2.msra.mxu0 0.0
    %93 = vmatprep.subr.mxu0 0.0
    %94 = vmatpush2.msra.mxu0 0.0
    %95 = vmatprep.subr.mxu0 0.0
    %96 = vmatpush2.msra.mxu0 0.0
    %97 = vmatprep.subr.mxu0 0.0
    %98 = vmatpush2.msra.mxu0 0.0
    %99 = vmatprep.subr.mxu0 0.0
    %100 = vmatpush2.msra.mxu0 0.0
    %101 = vmatprep.subr.mxu0 0.0
    %102 = vmatpush2.msra.mxu0 0.0
    %103 = vmatprep.subr.mxu0 0.0
    %104 = vmatpush2.msra.mxu0 0.0
    %105 = vmatprep.subr.mxu0 0.0
    %106 = vmatpush2.msra.mxu0 0.0
    %107 = vmatprep.subr.mxu0 0.0
    %108 = vmatpush2.msra.mxu0 0.0
    %109 = vmatprep.subr.mxu0 0.0
    %110 = vmatpush2.msra.mxu0 0.0
    %111 = vmatprep.subr.mxu0 0.0
    %112 = vmatpush2.msra.mxu0 0.0
    %113 = vmatprep.subr.mxu0 0.0
    %114 = vmatpush2.msra.mxu0 0.0
    %115 = vmatprep.subr.mxu0 0.0
    %116 = vmatpush2.msra.mxu0 0.0
    %117 = vmatprep.mubr.f32.mxu0 0.0
    %v118 = vand.u32 %v44, 4294901760
    %v119 = vsub.f32 %v44, %v118
    %v120 = vand.u32 %v119, 4294901760
    %v121 = vsub.f32 %v119, %v120
    %v122 = vand.u32 %v121, 4294901760
    %123 = vmatmul.mubr.f32.gmra.mxu0 %v122
    %v124 = vpop.f32.mrf.mxu0
    %v125 = vadd.f32 0.0, %v124
    %v126 = vpop.f32.mrf.mxu0
    %127 = vmatprep.mubr.f32.mxu0 0.0
    %v128 = vand.u32 %v47, 4294901760
    %v129 = vsub.f32 %v47, %v128
    %v130 = vand.u32 %v129, 4294901760
    %v131 = vsub.f32 %v129, %v130
    %v132 = vand.u32 %v131, 4294901760
    %133 = vmatmul.mubr.f32.gmra.mxu0 %v132
    %v134 = vpop.f32.mrf.mxu0
    %v135 = vadd.f32 0.0, %v134
    %v136 = vpop.f32.mrf.mxu0
    %137 = vdwg.mxu0
    %138 = vmatprep.subr.mxu0 0.0
    %139 = vmatpush1.msra.mxu0 0.0
    %140 = vmatprep.subr.mxu0 0.0
    %141 = vmatpush1.msra.mxu0 0.0
    %142 = vmatprep.subr.mxu0 0.0
    %143 = vmatpush1.msra.mxu0 0.0
    %144 = vmatprep.subr.mxu0 0.0
    %145 = vmatpush1.msra.mxu0 0.0
    %146 = vmatprep.subr.mxu0 0.0
    %147 = vmatpush1.msra.mxu0 0.0
    %148 = vmatprep.subr.mxu0 0.0
    %149 = vmatpush1.msra.mxu0 0.0
    %150 = vmatprep.subr.mxu0 0.0
    %151 = vmatpush1.msra.mxu0 0.0
    %152 = vmatprep.subr.mxu0 0.0
    %153 = vmatpush1.msra.mxu0 0.0
    %154 = vmatprep.subr.mxu0 0.0
    %155 = vmatpush1.msra.mxu0 0.0
    %156 = vmatprep.subr.mxu0 0.0
    %157 = vmatpush1.msra.mxu0 0.0
    %158 = vmatprep.subr.mxu0 0.0
    %159 = vmatpush1.msra.mxu0 0.0
    %160 = vmatprep.subr.mxu0 0.0
    %161 = vmatpush1.msra.mxu0 0.0
    %162 = vmatprep.subr.mxu0 0.0
    %163 = vmatpush1.msra.mxu0 0.0
    %164 = vmatprep.subr.mxu0 0.0
    %165 = vmatpush1.msra.mxu0 0.0
    %166 = vmatprep.subr.mxu0 0.0
    %167 = vmatpush1.msra.mxu0 0.0
    %168 = vmatprep.subr.mxu0 0.0
    %v169 = vand.u32 %v50, 4294901760
    %v170 = vsub.f32 %v50, %v169
    %v171 = vand.u32 %v170, 4294901760
    %v172 = vsub.f32 %v170, %v171
    %v173 = vand.u32 %v172, 4294901760
    %174 = vmatpush1.msra.mxu0 %v173
    %175 = vmatprep.subr.mxu0 0.0
    %176 = vmatpush2.msra.mxu0 0.0
    %177 = vmatprep.subr.mxu0 0.0
    %178 = vmatpush2.msra.mxu0 0.0
    %179 = vmatprep.subr.mxu0 0.0
    %180 = vmatpush2.msra.mxu0 0.0
    %181 = vmatprep.subr.mxu0 0.0
    %182 = vmatpush2.msra.mxu0 0.0
    %183 = vmatprep.subr.mxu0 0.0
    %184 = vmatpush2.msra.mxu0 0.0
    %185 = vmatprep.subr.mxu0 0.0
    %186 = vmatpush2.msra.mxu0 0.0
    %187 = vmatprep.subr.mxu0 0.0
    %188 = vmatpush2.msra.mxu0 0.0
    %189 = vmatprep.subr.mxu0 0.0
    %190 = vmatpush2.msra.mxu0 0.0
    %191 = vmatprep.subr.mxu0 0.0
    %192 = vmatpush2.msra.mxu0 0.0
    %193 = vmatprep.subr.mxu0 0.0
    %194 = vmatpush2.msra.mxu0 0.0
    %195 = vmatprep.subr.mxu0 0.0
    %196 = vmatpush2.msra.mxu0 0.0
    %197 = vmatprep.subr.mxu0 0.0
    %198 = vmatpush2.msra.mxu0 0.0
    %199 = vmatprep.subr.mxu0 0.0
    %200 = vmatpush2.msra.mxu0 0.0
    %201 = vmatprep.subr.mxu0 0.0
    %202 = vmatpush2.msra.mxu0 0.0
    %203 = vmatprep.subr.mxu0 0.0
    %204 = vmatpush2.msra.mxu0 0.0
    %205 = vmatprep.subr.mxu0 0.0
    %206 = vmatpush2.msra.mxu0 0.0
    %207 = vmatprep.mubr.f32.mxu0 0.0
    %v208 = vand.u32 %v44, 4294901760
    %209 = vmatmul.mubr.f32.gmra.mxu0 %v208
    %v210 = vpop.f32.mrf.mxu0
    %v211 = vadd.f32 %v125, %v210
    %v212 = vpop.f32.mrf.mxu0
    %213 = vmatprep.mubr.f32.mxu0 0.0
    %v214 = vand.u32 %v47, 4294901760
    %215 = vmatmul.mubr.f32.gmra.mxu0 %v214
    %v216 = vpop.f32.mrf.mxu0
    %v217 = vadd.f32 %v135, %v216
    %v218 = vpop.f32.mrf.mxu0
    %219 = vdwg.mxu0
    %220 = vmatprep.subr.mxu0 0.0
    %221 = vmatpush1.msra.mxu0 0.0
    %222 = vmatprep.subr.mxu0 0.0
    %223 = vmatpush1.msra.mxu0 0.0
    %224 = vmatprep.subr.mxu0 0.0
    %225 = vmatpush1.msra.mxu0 0.0
    %226 = vmatprep.subr.mxu0 0.0
    %227 = vmatpush1.msra.mxu0 0.0
    %228 = vmatprep.subr.mxu0 0.0
    %229 = vmatpush1.msra.mxu0 0.0
    %230 = vmatprep.subr.mxu0 0.0
    %231 = vmatpush1.msra.mxu0 0.0
    %232 = vmatprep.subr.mxu0 0.0
    %233 = vmatpush1.msra.mxu0 0.0
    %234 = vmatprep.subr.mxu0 0.0
    %235 = vmatpush1.msra.mxu0 0.0
    %236 = vmatprep.subr.mxu0 0.0
    %237 = vmatpush1.msra.mxu0 0.0
    %238 = vmatprep.subr.mxu0 0.0
    %239 = vmatpush1.msra.mxu0 0.0
    %240 = vmatprep.subr.mxu0 0.0
    %241 = vmatpush1.msra.mxu0 0.0
    %242 = vmatprep.subr.mxu0 0.0
    %243 = vmatpush1.msra.mxu0 0.0
    %244 = vmatprep.subr.mxu0 0.0
    %245 = vmatpush1.msra.mxu0 0.0
    %246 = vmatprep.subr.mxu0 0.0
    %247 = vmatpush1.msra.mxu0 0.0
    %248 = vmatprep.subr.mxu0 0.0
    %249 = vmatpush1.msra.mxu0 0.0
    %250 = vmatprep.subr.mxu0 0.0
    %v251 = vand.u32 %v50, 4294901760
    %v252 = vsub.f32 %v50, %v251
    %253 = vmatpush1.msra.mxu0 %v252
    %254 = vmatprep.subr.mxu0 0.0
    %255 = vmatpush2.msra.mxu0 0.0
    %256 = vmatprep.subr.mxu0 0.0
    %257 = vmatpush2.msra.mxu0 0.0
    %258 = vmatprep.subr.mxu0 0.0
    %259 = vmatpush2.msra.mxu0 0.0
    %260 = vmatprep.subr.mxu0 0.0
    %261 = vmatpush2.msra.mxu0 0.0
    %262 = vmatprep.subr.mxu0 0.0
    %263 = vmatpush2.msra.mxu0 0.0
    %264 = vmatprep.subr.mxu0 0.0
    %265 = vmatpush2.msra.mxu0 0.0
    %266 = vmatprep.subr.mxu0 0.0
    %267 = vmatpush2.msra.mxu0 0.0
    %268 = vmatprep.subr.mxu0 0.0
    %269 = vmatpush2.msra.mxu0 0.0
    %270 = vmatprep.subr.mxu0 0.0
    %271 = vmatpush2.msra.mxu0 0.0
    %272 = vmatprep.subr.mxu0 0.0
    %273 = vmatpush2.msra.mxu0 0.0
    %274 = vmatprep.subr.mxu0 0.0
    %275 = vmatpush2.msra.mxu0 0.0
    %276 = vmatprep.subr.mxu0 0.0
    %277 = vmatpush2.msra.mxu0 0.0
    %278 = vmatprep.subr.mxu0 0.0
    %279 = vmatpush2.msra.mxu0 0.0
    %280 = vmatprep.subr.mxu0 0.0
    %281 = vmatpush2.msra.mxu0 0.0
    %282 = vmatprep.subr.mxu0 0.0
    %283 = vmatpush2.msra.mxu0 0.0
    %284 = vmatprep.subr.mxu0 0.0
    %285 = vmatpush2.msra.mxu0 0.0
    %286 = vmatprep.mubr.f32.mxu0 0.0
    %v287 = vand.u32 %v44, 4294901760
    %v288 = vsub.f32 %v44, %v287
    %289 = vmatmul.mubr.f32.gmra.mxu0 %v288
    %v290 = vpop.f32.mrf.mxu0
    %v291 = vadd.f32 %v211, %v290
    %v292 = vpop.f32.mrf.mxu0
    %293 = vmatprep.mubr.f32.mxu0 0.0
    %v294 = vand.u32 %v47, 4294901760
    %v295 = vsub.f32 %v47, %v294
    %296 = vmatmul.mubr.f32.gmra.mxu0 %v295
    %v297 = vpop.f32.mrf.mxu0
    %v298 = vadd.f32 %v217, %v297
    %v299 = vpop.f32.mrf.mxu0
    %300 = vdwg.mxu0
    %301 = vmatprep.subr.mxu0 0.0
    %302 = vmatpush1.msra.mxu0 0.0
    %303 = vmatprep.subr.mxu0 0.0
    %304 = vmatpush1.msra.mxu0 0.0
    %305 = vmatprep.subr.mxu0 0.0
    %306 = vmatpush1.msra.mxu0 0.0
    %307 = vmatprep.subr.mxu0 0.0
    %308 = vmatpush1.msra.mxu0 0.0
    %309 = vmatprep.subr.mxu0 0.0
    %310 = vmatpush1.msra.mxu0 0.0
    %311 = vmatprep.subr.mxu0 0.0
    %312 = vmatpush1.msra.mxu0 0.0
    %313 = vmatprep.subr.mxu0 0.0
    %314 = vmatpush1.msra.mxu0 0.0
    %315 = vmatprep.subr.mxu0 0.0
    %316 = vmatpush1.msra.mxu0 0.0
    %317 = vmatprep.subr.mxu0 0.0
    %318 = vmatpush1.msra.mxu0 0.0
    %319 = vmatprep.subr.mxu0 0.0
    %320 = vmatpush1.msra.mxu0 0.0
    %321 = vmatprep.subr.mxu0 0.0
    %322 = vmatpush1.msra.mxu0 0.0
    %323 = vmatprep.subr.mxu0 0.0
    %324 = vmatpush1.msra.mxu0 0.0
    %325 = vmatprep.subr.mxu0 0.0
    %326 = vmatpush1.msra.mxu0 0.0
    %327 = vmatprep.subr.mxu0 0.0
    %328 = vmatpush1.msra.mxu0 0.0
    %329 = vmatprep.subr.mxu0 0.0
    %330 = vmatpush1.msra.mxu0 0.0
    %331 = vmatprep.subr.mxu0 0.0
    %v332 = vand.u32 %v50, 4294901760
    %333 = vmatpush1.msra.mxu0 %v332
    %334 = vmatprep.subr.mxu0 0.0
    %335 = vmatpush2.msra.mxu0 0.0
    %336 = vmatprep.subr.mxu0 0.0
    %337 = vmatpush2.msra.mxu0 0.0
    %338 = vmatprep.subr.mxu0 0.0
    %339 = vmatpush2.msra.mxu0 0.0
    %340 = vmatprep.subr.mxu0 0.0
    %341 = vmatpush2.msra.mxu0 0.0
    %342 = vmatprep.subr.mxu0 0.0
    %343 = vmatpush2.msra.mxu0 0.0
    %344 = vmatprep.subr.mxu0 0.0
    %345 = vmatpush2.msra.mxu0 0.0
    %346 = vmatprep.subr.mxu0 0.0
    %347 = vmatpush2.msra.mxu0 0.0
    %348 = vmatprep.subr.mxu0 0.0
    %349 = vmatpush2.msra.mxu0 0.0
    %350 = vmatprep.subr.mxu0 0.0
    %351 = vmatpush2.msra.mxu0 0.0
    %352 = vmatprep.subr.mxu0 0.0
    %353 = vmatpush2.msra.mxu0 0.0
    %354 = vmatprep.subr.mxu0 0.0
    %355 = vmatpush2.msra.mxu0 0.0
    %356 = vmatprep.subr.mxu0 0.0
    %357 = vmatpush2.msra.mxu0 0.0
    %358 = vmatprep.subr.mxu0 0.0
    %359 = vmatpush2.msra.mxu0 0.0
    %360 = vmatprep.subr.mxu0 0.0
    %361 = vmatpush2.msra.mxu0 0.0
    %362 = vmatprep.subr.mxu0 0.0
    %363 = vmatpush2.msra.mxu0 0.0
    %364 = vmatprep.subr.mxu0 0.0
    %365 = vmatpush2.msra.mxu0 0.0
    %366 = vmatprep.mubr.f32.mxu0 0.0
    %v367 = vand.u32 %v44, 4294901760
    %v368 = vsub.f32 %v44, %v367
    %v369 = vand.u32 %v368, 4294901760
    %370 = vmatmul.mubr.f32.gmra.mxu0 %v369
    %v371 = vpop.f32.mrf.mxu0
    %v372 = vadd.f32 %v291, %v371
    %v373 = vpop.f32.mrf.mxu0
    %374 = vmatprep.mubr.f32.mxu0 0.0
    %v375 = vand.u32 %v47, 4294901760
    %v376 = vsub.f32 %v47, %v375
    %v377 = vand.u32 %v376, 4294901760
    %378 = vmatmul.mubr.f32.gmra.mxu0 %v377
    %v379 = vpop.f32.mrf.mxu0
    %v380 = vadd.f32 %v298, %v379
    %v381 = vpop.f32.mrf.mxu0
    %382 = vdwg.mxu0
    %383 = vmatprep.subr.mxu0 0.0
    %384 = vmatpush1.msra.mxu0 0.0
    %385 = vmatprep.subr.mxu0 0.0
    %386 = vmatpush1.msra.mxu0 0.0
    %387 = vmatprep.subr.mxu0 0.0
    %388 = vmatpush1.msra.mxu0 0.0
    %389 = vmatprep.subr.mxu0 0.0
    %390 = vmatpush1.msra.mxu0 0.0
    %391 = vmatprep.subr.mxu0 0.0
    %392 = vmatpush1.msra.mxu0 0.0
    %393 = vmatprep.subr.mxu0 0.0
    %394 = vmatpush1.msra.mxu0 0.0
    %395 = vmatprep.subr.mxu0 0.0
    %396 = vmatpush1.msra.mxu0 0.0
    %397 = vmatprep.subr.mxu0 0.0
    %398 = vmatpush1.msra.mxu0 0.0
    %399 = vmatprep.subr.mxu0 0.0
    %400 = vmatpush1.msra.mxu0 0.0
    %401 = vmatprep.subr.mxu0 0.0
    %402 = vmatpush1.msra.mxu0 0.0
    %403 = vmatprep.subr.mxu0 0.0
    %404 = vmatpush1.msra.mxu0 0.0
    %405 = vmatprep.subr.mxu0 0.0
    %406 = vmatpush1.msra.mxu0 0.0
    %407 = vmatprep.subr.mxu0 0.0
    %408 = vmatpush1.msra.mxu0 0.0
    %409 = vmatprep.subr.mxu0 0.0
    %410 = vmatpush1.msra.mxu0 0.0
    %411 = vmatprep.subr.mxu0 0.0
    %412 = vmatpush1.msra.mxu0 0.0
    %413 = vmatprep.subr.mxu0 0.0
    %v414 = vand.u32 %v50, 4294901760
    %v415 = vsub.f32 %v50, %v414
    %v416 = vand.u32 %v415, 4294901760
    %417 = vmatpush1.msra.mxu0 %v416
    %418 = vmatprep.subr.mxu0 0.0
    %419 = vmatpush2.msra.mxu0 0.0
    %420 = vmatprep.subr.mxu0 0.0
    %421 = vmatpush2.msra.mxu0 0.0
    %422 = vmatprep.subr.mxu0 0.0
    %423 = vmatpush2.msra.mxu0 0.0
    %424 = vmatprep.subr.mxu0 0.0
    %425 = vmatpush2.msra.mxu0 0.0
    %426 = vmatprep.subr.mxu0 0.0
    %427 = vmatpush2.msra.mxu0 0.0
    %428 = vmatprep.subr.mxu0 0.0
    %429 = vmatpush2.msra.mxu0 0.0
    %430 = vmatprep.subr.mxu0 0.0
    %431 = vmatpush2.msra.mxu0 0.0
    %432 = vmatprep.subr.mxu0 0.0
    %433 = vmatpush2.msra.mxu0 0.0
    %434 = vmatprep.subr.mxu0 0.0
    %435 = vmatpush2.msra.mxu0 0.0
    %436 = vmatprep.subr.mxu0 0.0
    %437 = vmatpush2.msra.mxu0 0.0
    %438 = vmatprep.subr.mxu0 0.0
    %439 = vmatpush2.msra.mxu0 0.0
    %440 = vmatprep.subr.mxu0 0.0
    %441 = vmatpush2.msra.mxu0 0.0
    %442 = vmatprep.subr.mxu0 0.0
    %443 = vmatpush2.msra.mxu0 0.0
    %444 = vmatprep.subr.mxu0 0.0
    %445 = vmatpush2.msra.mxu0 0.0
    %446 = vmatprep.subr.mxu0 0.0
    %447 = vmatpush2.msra.mxu0 0.0
    %448 = vmatprep.subr.mxu0 0.0
    %449 = vmatpush2.msra.mxu0 0.0
    %450 = vmatprep.mubr.f32.mxu0 0.0
    %v451 = vand.u32 %v44, 4294901760
    %452 = vmatmul.mubr.f32.gmra.mxu0 %v451
    %v453 = vpop.f32.mrf.mxu0
    %v454 = vadd.f32 %v372, %v453
    %v455 = vpop.f32.mrf.mxu0
    %456 = vmatprep.mubr.f32.mxu0 0.0
    %v457 = vand.u32 %v47, 4294901760
    %458 = vmatmul.mubr.f32.gmra.mxu0 %v457
    %v459 = vpop.f32.mrf.mxu0
    %v460 = vadd.f32 %v380, %v459
    %v461 = vpop.f32.mrf.mxu0
    %462 = vdwg.mxu0
    %463 = vmatprep.subr.mxu0 0.0
    %464 = vmatpush1.msra.mxu0 0.0
    %465 = vmatprep.subr.mxu0 0.0
    %466 = vmatpush1.msra.mxu0 0.0
    %467 = vmatprep.subr.mxu0 0.0
    %468 = vmatpush1.msra.mxu0 0.0
    %469 = vmatprep.subr.mxu0 0.0
    %470 = vmatpush1.msra.mxu0 0.0
    %471 = vmatprep.subr.mxu0 0.0
    %472 = vmatpush1.msra.mxu0 0.0
    %473 = vmatprep.subr.mxu0 0.0
    %474 = vmatpush1.msra.mxu0 0.0
    %475 = vmatprep.subr.mxu0 0.0
    %476 = vmatpush1.msra.mxu0 0.0
    %477 = vmatprep.subr.mxu0 0.0
    %478 = vmatpush1.msra.mxu0 0.0
    %479 = vmatprep.subr.mxu0 0.0
    %480 = vmatpush1.msra.mxu0 0.0
    %481 = vmatprep.subr.mxu0 0.0
    %482 = vmatpush1.msra.mxu0 0.0
    %483 = vmatprep.subr.mxu0 0.0
    %484 = vmatpush1.msra.mxu0 0.0
    %485 = vmatprep.subr.mxu0 0.0
    %486 = vmatpush1.msra.mxu0 0.0
    %487 = vmatprep.subr.mxu0 0.0
    %488 = vmatpush1.msra.mxu0 0.0
    %489 = vmatprep.subr.mxu0 0.0
    %490 = vmatpush1.msra.mxu0 0.0
    %491 = vmatprep.subr.mxu0 0.0
    %492 = vmatpush1.msra.mxu0 0.0
    %493 = vmatprep.subr.mxu0 0.0
    %v494 = vand.u32 %v50, 4294901760
    %495 = vmatpush1.msra.mxu0 %v494
    %496 = vmatprep.subr.mxu0 0.0
    %497 = vmatpush2.msra.mxu0 0.0
    %498 = vmatprep.subr.mxu0 0.0
    %499 = vmatpush2.msra.mxu0 0.0
    %500 = vmatprep.subr.mxu0 0.0
    %501 = vmatpush2.msra.mxu0 0.0
    %502 = vmatprep.subr.mxu0 0.0
    %503 = vmatpush2.msra.mxu0 0.0
    %504 = vmatprep.subr.mxu0 0.0
    %505 = vmatpush2.msra.mxu0 0.0
    %506 = vmatprep.subr.mxu0 0.0
    %507 = vmatpush2.msra.mxu0 0.0
    %508 = vmatprep.subr.mxu0 0.0
    %509 = vmatpush2.msra.mxu0 0.0
    %510 = vmatprep.subr.mxu0 0.0
    %511 = vmatpush2.msra.mxu0 0.0
    %512 = vmatprep.subr.mxu0 0.0
    %513 = vmatpush2.msra.mxu0 0.0
    %514 = vmatprep.subr.mxu0 0.0
    %515 = vmatpush2.msra.mxu0 0.0
    %516 = vmatprep.subr.mxu0 0.0
    %517 = vmatpush2.msra.mxu0 0.0
    %518 = vmatprep.subr.mxu0 0.0
    %519 = vmatpush2.msra.mxu0 0.0
    %520 = vmatprep.subr.mxu0 0.0
    %521 = vmatpush2.msra.mxu0 0.0
    %522 = vmatprep.subr.mxu0 0.0
    %523 = vmatpush2.msra.mxu0 0.0
    %524 = vmatprep.subr.mxu0 0.0
    %525 = vmatpush2.msra.mxu0 0.0
    %526 = vmatprep.subr.mxu0 0.0
    %527 = vmatpush2.msra.mxu0 0.0
    %528 = vmatprep.mubr.f32.mxu0 0.0
    %v529 = vand.u32 %v44, 4294901760
    %530 = vmatmul.mubr.f32.gmra.mxu0 %v529
    %v531 = vpop.f32.mrf.mxu0
    %v532 = vadd.f32 %v454, %v531
    %v533 = vpop.f32.mrf.mxu0
    %534 = vmatprep.mubr.f32.mxu0 0.0
    %v535 = vand.u32 %v47, 4294901760
    %536 = vmatmul.mubr.f32.gmra.mxu0 %v535
    %v537 = vpop.f32.mrf.mxu0
    %v538 = vadd.f32 %v460, %v537
    %v539 = vpop.f32.mrf.mxu0
    %540 = vdwg.mxu0
    %v541 = vmul.f32 %v532, 2.0
    %v542 = vmul.f32 %v538, 2.0
    %v543 = vsub.f32 %v39, %v541
    %v544 = vsub.f32 %v39, %v542
    %v545 = vld [vmem:[%s3] sm:$0xff]
    %v546 = vld [vmem:[%s3 + $0x8] sm:$0xff]
    %548 = vset.pattern.permute.xlu0 0
    %549 = vperm.xlu0 %548, %v545
    %v550 = vpop.permute.xlu0 %549
    %553 = vset.pattern.permute.xlu0 0
    %554 = vperm.xlu0 %553, %v546
    %v555 = vpop.permute.xlu0 %554
    %v557 = vadd.f32 %v543, %v550
    %v558 = vadd.f32 %v544, %v555
    %v559 = vmax.f32 %v557, 0.0
    %v560 = vmax.f32 %v558, 0.0
    %v561 = vsub.f32 0.0, %v559
    %v562 = vsub.f32 0.0, %v560
    %v563 = vld [vmem:[%s4] sm:$0xff]
    %v564 = vld [vmem:[%s4 + $0x8] sm:$0xff]
    %566 = vset.pattern.permute.xlu0 0
    %567 = vperm.xlu0 %566, %v563
    %v568 = vpop.permute.xlu0 %567
    %571 = vset.pattern.permute.xlu0 0
    %572 = vperm.xlu0 %571, %v564
    %v573 = vpop.permute.xlu0 %572
    %v575 = vmul.f32 %v561, %v568
    %v576 = vmul.f32 %v562, %v573
    %v577 = vmul.f32 %v575, 1.442695
    %v578 = vpow.pop %v577
    %v579 = vmul.f32 %v576, 1.442695
    %v580 = vpow.pop %v579
    %v581 = vld [vmem:[%s1] sm:$0xff]
    %v582 = vld [vmem:[%s1 + $0x8] sm:$0xff]
    %v583 = vmul.f32 %v581, %v578
    %v584 = vmul.f32 %v582, %v580
    %v585 = vmul.f32 %v583, %v583
    %v586 = vmul.f32 %v584, %v584
    %v587 = vadd.f32 %v585, %v586
    %v588 = vrot.slane %v587, 4
    %v589 = vadd.f32 %v587, %v588
    %v590 = vrot.slane %v589, 2
    %v591 = vadd.f32 %v589, %v590
    %v592 = vrot.slane %v591, 1
    %v593 = vadd.f32 %v591, %v592
    %v594 = vld [vmem:[%s5] sm:$0x3]
    %vm595 = vcmask 130048
    %v597 = vsel %vm595, %v594, 0
    %599 = vmatprep.subr.mxu0 0.0
    %600 = vmatpush1.msra.mxu0 0.0
    %601 = vmatprep.subr.mxu0 0.0
    %602 = vmatpush1.msra.mxu0 0.0
    %603 = vmatprep.subr.mxu0 0.0
    %604 = vmatpush1.msra.mxu0 0.0
    %605 = vmatprep.subr.mxu0 0.0
    %606 = vmatpush1.msra.mxu0 0.0
    %607 = vmatprep.subr.mxu0 0.0
    %608 = vmatpush1.msra.mxu0 0.0
    %609 = vmatprep.subr.mxu0 0.0
    %610 = vmatpush1.msra.mxu0 0.0
    %611 = vmatprep.subr.mxu0 0.0
    %612 = vmatpush1.msra.mxu0 0.0
    %613 = vmatprep.subr.mxu0 0.0
    %614 = vmatpush1.msra.mxu0 0.0
    %615 = vmatprep.subr.mxu0 0.0
    %616 = vmatpush1.msra.mxu0 0.0
    %617 = vmatprep.subr.mxu0 0.0
    %618 = vmatpush1.msra.mxu0 0.0
    %619 = vmatprep.subr.mxu0 0.0
    %620 = vmatpush1.msra.mxu0 0.0
    %621 = vmatprep.subr.mxu0 0.0
    %622 = vmatpush1.msra.mxu0 0.0
    %623 = vmatprep.subr.mxu0 0.0
    %624 = vmatpush1.msra.mxu0 0.0
    %625 = vmatprep.subr.mxu0 0.0
    %626 = vmatpush1.msra.mxu0 0.0
    %627 = vmatprep.subr.mxu0 0.0
    %v628 = vand.u32 %v584, 4294901760
    %629 = vmatpush1.msra.mxu0 %v628
    %630 = vmatprep.subr.mxu0 0.0
    %v631 = vand.u32 %v583, 4294901760
    %632 = vmatpush1.msra.mxu0 %v631
    %633 = vmatprep.subr.mxu0 0.0
    %634 = vmatpush2.msra.mxu0 0.0
    %635 = vmatprep.subr.mxu0 0.0
    %636 = vmatpush2.msra.mxu0 0.0
    %637 = vmatprep.subr.mxu0 0.0
    %638 = vmatpush2.msra.mxu0 0.0
    %639 = vmatprep.subr.mxu0 0.0
    %640 = vmatpush2.msra.mxu0 0.0
    %641 = vmatprep.subr.mxu0 0.0
    %642 = vmatpush2.msra.mxu0 0.0
    %643 = vmatprep.subr.mxu0 0.0
    %644 = vmatpush2.msra.mxu0 0.0
    %645 = vmatprep.subr.mxu0 0.0
    %646 = vmatpush2.msra.mxu0 0.0
    %647 = vmatprep.subr.mxu0 0.0
    %648 = vmatpush2.msra.mxu0 0.0
    %649 = vmatprep.subr.mxu0 0.0
    %650 = vmatpush2.msra.mxu0 0.0
    %651 = vmatprep.subr.mxu0 0.0
    %652 = vmatpush2.msra.mxu0 0.0
    %653 = vmatprep.subr.mxu0 0.0
    %654 = vmatpush2.msra.mxu0 0.0
    %655 = vmatprep.subr.mxu0 0.0
    %656 = vmatpush2.msra.mxu0 0.0
    %657 = vmatprep.subr.mxu0 0.0
    %658 = vmatpush2.msra.mxu0 0.0
    %659 = vmatprep.subr.mxu0 0.0
    %660 = vmatpush2.msra.mxu0 0.0
    %661 = vmatprep.subr.mxu0 0.0
    %662 = vmatpush2.msra.mxu0 0.0
    %663 = vmatprep.subr.mxu0 0.0
    %664 = vmatpush2.msra.mxu0 0.0
    %665 = vmatprep.mubr.f32.mxu0 0.0
    %v666 = vand.u32 %v597, 4294901760
    %v667 = vsub.f32 %v597, %v666
    %v668 = vand.u32 %v667, 4294901760
    %v669 = vsub.f32 %v667, %v668
    %v670 = vand.u32 %v669, 4294901760
    %671 = vmatmul.mubr.f32.gmra.mxu0 %v670
    %v672 = vpop.f32.mrf.mxu0
    %v673 = vadd.f32 0.0, %v672
    %v674 = vpop.f32.mrf.mxu0
    %675 = vdwg.mxu0
    %676 = vmatprep.subr.mxu0 0.0
    %677 = vmatpush1.msra.mxu0 0.0
    %678 = vmatprep.subr.mxu0 0.0
    %679 = vmatpush1.msra.mxu0 0.0
    %680 = vmatprep.subr.mxu0 0.0
    %681 = vmatpush1.msra.mxu0 0.0
    %682 = vmatprep.subr.mxu0 0.0
    %683 = vmatpush1.msra.mxu0 0.0
    %684 = vmatprep.subr.mxu0 0.0
    %685 = vmatpush1.msra.mxu0 0.0
    %686 = vmatprep.subr.mxu0 0.0
    %687 = vmatpush1.msra.mxu0 0.0
    %688 = vmatprep.subr.mxu0 0.0
    %689 = vmatpush1.msra.mxu0 0.0
    %690 = vmatprep.subr.mxu0 0.0
    %691 = vmatpush1.msra.mxu0 0.0
    %692 = vmatprep.subr.mxu0 0.0
    %693 = vmatpush1.msra.mxu0 0.0
    %694 = vmatprep.subr.mxu0 0.0
    %695 = vmatpush1.msra.mxu0 0.0
    %696 = vmatprep.subr.mxu0 0.0
    %697 = vmatpush1.msra.mxu0 0.0
    %698 = vmatprep.subr.mxu0 0.0
    %699 = vmatpush1.msra.mxu0 0.0
    %700 = vmatprep.subr.mxu0 0.0
    %701 = vmatpush1.msra.mxu0 0.0
    %702 = vmatprep.subr.mxu0 0.0
    %703 = vmatpush1.msra.mxu0 0.0
    %704 = vmatprep.subr.mxu0 0.0
    %v705 = vand.u32 %v584, 4294901760
    %v706 = vsub.f32 %v584, %v705
    %v707 = vand.u32 %v706, 4294901760
    %v708 = vsub.f32 %v706, %v707
    %v709 = vand.u32 %v708, 4294901760
    %710 = vmatpush1.msra.mxu0 %v709
    %711 = vmatprep.subr.mxu0 0.0
    %v712 = vand.u32 %v583, 4294901760
    %v713 = vsub.f32 %v583, %v712
    %v714 = vand.u32 %v713, 4294901760
    %v715 = vsub.f32 %v713, %v714
    %v716 = vand.u32 %v715, 4294901760
    %717 = vmatpush1.msra.mxu0 %v716
    %718 = vmatprep.subr.mxu0 0.0
    %719 = vmatpush2.msra.mxu0 0.0
    %720 = vmatprep.subr.mxu0 0.0
    %721 = vmatpush2.msra.mxu0 0.0
    %722 = vmatprep.subr.mxu0 0.0
    %723 = vmatpush2.msra.mxu0 0.0
    %724 = vmatprep.subr.mxu0 0.0
    %725 = vmatpush2.msra.mxu0 0.0
    %726 = vmatprep.subr.mxu0 0.0
    %727 = vmatpush2.msra.mxu0 0.0
    %728 = vmatprep.subr.mxu0 0.0
    %729 = vmatpush2.msra.mxu0 0.0
    %730 = vmatprep.subr.mxu0 0.0
    %731 = vmatpush2.msra.mxu0 0.0
    %732 = vmatprep.subr.mxu0 0.0
    %733 = vmatpush2.msra.mxu0 0.0
    %734 = vmatprep.subr.mxu0 0.0
    %735 = vmatpush2.msra.mxu0 0.0
    %736 = vmatprep.subr.mxu0 0.0
    %737 = vmatpush2.msra.mxu0 0.0
    %738 = vmatprep.subr.mxu0 0.0
    %739 = vmatpush2.msra.mxu0 0.0
    %740 = vmatprep.subr.mxu0 0.0
    %741 = vmatpush2.msra.mxu0 0.0
    %742 = vmatprep.subr.mxu0 0.0
    %743 = vmatpush2.msra.mxu0 0.0
    %744 = vmatprep.subr.mxu0 0.0
    %745 = vmatpush2.msra.mxu0 0.0
    %746 = vmatprep.subr.mxu0 0.0
    %747 = vmatpush2.msra.mxu0 0.0
    %748 = vmatprep.subr.mxu0 0.0
    %749 = vmatpush2.msra.mxu0 0.0
    %750 = vmatprep.mubr.f32.mxu0 0.0
    %v751 = vand.u32 %v597, 4294901760
    %752 = vmatmul.mubr.f32.gmra.mxu0 %v751
    %v753 = vpop.f32.mrf.mxu0
    %v754 = vadd.f32 %v673, %v753
    %v755 = vpop.f32.mrf.mxu0
    %756 = vdwg.mxu0
    %757 = vmatprep.subr.mxu0 0.0
    %758 = vmatpush1.msra.mxu0 0.0
    %759 = vmatprep.subr.mxu0 0.0
    %760 = vmatpush1.msra.mxu0 0.0
    %761 = vmatprep.subr.mxu0 0.0
    %762 = vmatpush1.msra.mxu0 0.0
    %763 = vmatprep.subr.mxu0 0.0
    %764 = vmatpush1.msra.mxu0 0.0
    %765 = vmatprep.subr.mxu0 0.0
    %766 = vmatpush1.msra.mxu0 0.0
    %767 = vmatprep.subr.mxu0 0.0
    %768 = vmatpush1.msra.mxu0 0.0
    %769 = vmatprep.subr.mxu0 0.0
    %770 = vmatpush1.msra.mxu0 0.0
    %771 = vmatprep.subr.mxu0 0.0
    %772 = vmatpush1.msra.mxu0 0.0
    %773 = vmatprep.subr.mxu0 0.0
    %774 = vmatpush1.msra.mxu0 0.0
    %775 = vmatprep.subr.mxu0 0.0
    %776 = vmatpush1.msra.mxu0 0.0
    %777 = vmatprep.subr.mxu0 0.0
    %778 = vmatpush1.msra.mxu0 0.0
    %779 = vmatprep.subr.mxu0 0.0
    %780 = vmatpush1.msra.mxu0 0.0
    %781 = vmatprep.subr.mxu0 0.0
    %782 = vmatpush1.msra.mxu0 0.0
    %783 = vmatprep.subr.mxu0 0.0
    %784 = vmatpush1.msra.mxu0 0.0
    %785 = vmatprep.subr.mxu0 0.0
    %v786 = vand.u32 %v584, 4294901760
    %v787 = vsub.f32 %v584, %v786
    %788 = vmatpush1.msra.mxu0 %v787
    %789 = vmatprep.subr.mxu0 0.0
    %v790 = vand.u32 %v583, 4294901760
    %v791 = vsub.f32 %v583, %v790
    %792 = vmatpush1.msra.mxu0 %v791
    %793 = vmatprep.subr.mxu0 0.0
    %794 = vmatpush2.msra.mxu0 0.0
    %795 = vmatprep.subr.mxu0 0.0
    %796 = vmatpush2.msra.mxu0 0.0
    %797 = vmatprep.subr.mxu0 0.0
    %798 = vmatpush2.msra.mxu0 0.0
    %799 = vmatprep.subr.mxu0 0.0
    %800 = vmatpush2.msra.mxu0 0.0
    %801 = vmatprep.subr.mxu0 0.0
    %802 = vmatpush2.msra.mxu0 0.0
    %803 = vmatprep.subr.mxu0 0.0
    %804 = vmatpush2.msra.mxu0 0.0
    %805 = vmatprep.subr.mxu0 0.0
    %806 = vmatpush2.msra.mxu0 0.0
    %807 = vmatprep.subr.mxu0 0.0
    %808 = vmatpush2.msra.mxu0 0.0
    %809 = vmatprep.subr.mxu0 0.0
    %810 = vmatpush2.msra.mxu0 0.0
    %811 = vmatprep.subr.mxu0 0.0
    %812 = vmatpush2.msra.mxu0 0.0
    %813 = vmatprep.subr.mxu0 0.0
    %814 = vmatpush2.msra.mxu0 0.0
    %815 = vmatprep.subr.mxu0 0.0
    %816 = vmatpush2.msra.mxu0 0.0
    %817 = vmatprep.subr.mxu0 0.0
    %818 = vmatpush2.msra.mxu0 0.0
    %819 = vmatprep.subr.mxu0 0.0
    %820 = vmatpush2.msra.mxu0 0.0
    %821 = vmatprep.subr.mxu0 0.0
    %822 = vmatpush2.msra.mxu0 0.0
    %823 = vmatprep.subr.mxu0 0.0
    %824 = vmatpush2.msra.mxu0 0.0
    %825 = vmatprep.mubr.f32.mxu0 0.0
    %v826 = vand.u32 %v597, 4294901760
    %v827 = vsub.f32 %v597, %v826
    %828 = vmatmul.mubr.f32.gmra.mxu0 %v827
    %v829 = vpop.f32.mrf.mxu0
    %v830 = vadd.f32 %v754, %v829
    %v831 = vpop.f32.mrf.mxu0
    %832 = vdwg.mxu0
    %833 = vmatprep.subr.mxu0 0.0
    %834 = vmatpush1.msra.mxu0 0.0
    %835 = vmatprep.subr.mxu0 0.0
    %836 = vmatpush1.msra.mxu0 0.0
    %837 = vmatprep.subr.mxu0 0.0
    %838 = vmatpush1.msra.mxu0 0.0
    %839 = vmatprep.subr.mxu0 0.0
    %840 = vmatpush1.msra.mxu0 0.0
    %841 = vmatprep.subr.mxu0 0.0
    %842 = vmatpush1.msra.mxu0 0.0
    %843 = vmatprep.subr.mxu0 0.0
    %844 = vmatpush1.msra.mxu0 0.0
    %845 = vmatprep.subr.mxu0 0.0
    %846 = vmatpush1.msra.mxu0 0.0
    %847 = vmatprep.subr.mxu0 0.0
    %848 = vmatpush1.msra.mxu0 0.0
    %849 = vmatprep.subr.mxu0 0.0
    %850 = vmatpush1.msra.mxu0 0.0
    %851 = vmatprep.subr.mxu0 0.0
    %852 = vmatpush1.msra.mxu0 0.0
    %853 = vmatprep.subr.mxu0 0.0
    %854 = vmatpush1.msra.mxu0 0.0
    %855 = vmatprep.subr.mxu0 0.0
    %856 = vmatpush1.msra.mxu0 0.0
    %857 = vmatprep.subr.mxu0 0.0
    %858 = vmatpush1.msra.mxu0 0.0
    %859 = vmatprep.subr.mxu0 0.0
    %860 = vmatpush1.msra.mxu0 0.0
    %861 = vmatprep.subr.mxu0 0.0
    %v862 = vand.u32 %v584, 4294901760
    %863 = vmatpush1.msra.mxu0 %v862
    %864 = vmatprep.subr.mxu0 0.0
    %v865 = vand.u32 %v583, 4294901760
    %866 = vmatpush1.msra.mxu0 %v865
    %867 = vmatprep.subr.mxu0 0.0
    %868 = vmatpush2.msra.mxu0 0.0
    %869 = vmatprep.subr.mxu0 0.0
    %870 = vmatpush2.msra.mxu0 0.0
    %871 = vmatprep.subr.mxu0 0.0
    %872 = vmatpush2.msra.mxu0 0.0
    %873 = vmatprep.subr.mxu0 0.0
    %874 = vmatpush2.msra.mxu0 0.0
    %875 = vmatprep.subr.mxu0 0.0
    %876 = vmatpush2.msra.mxu0 0.0
    %877 = vmatprep.subr.mxu0 0.0
    %878 = vmatpush2.msra.mxu0 0.0
    %879 = vmatprep.subr.mxu0 0.0
    %880 = vmatpush2.msra.mxu0 0.0
    %881 = vmatprep.subr.mxu0 0.0
    %882 = vmatpush2.msra.mxu0 0.0
    %883 = vmatprep.subr.mxu0 0.0
    %884 = vmatpush2.msra.mxu0 0.0
    %885 = vmatprep.subr.mxu0 0.0
    %886 = vmatpush2.msra.mxu0 0.0
    %887 = vmatprep.subr.mxu0 0.0
    %888 = vmatpush2.msra.mxu0 0.0
    %889 = vmatprep.subr.mxu0 0.0
    %890 = vmatpush2.msra.mxu0 0.0
    %891 = vmatprep.subr.mxu0 0.0
    %892 = vmatpush2.msra.mxu0 0.0
    %893 = vmatprep.subr.mxu0 0.0
    %894 = vmatpush2.msra.mxu0 0.0
    %895 = vmatprep.subr.mxu0 0.0
    %896 = vmatpush2.msra.mxu0 0.0
    %897 = vmatprep.subr.mxu0 0.0
    %898 = vmatpush2.msra.mxu0 0.0
    %899 = vmatprep.mubr.f32.mxu0 0.0
    %v900 = vand.u32 %v597, 4294901760
    %v901 = vsub.f32 %v597, %v900
    %v902 = vand.u32 %v901, 4294901760
    %903 = vmatmul.mubr.f32.gmra.mxu0 %v902
    %v904 = vpop.f32.mrf.mxu0
    %v905 = vadd.f32 %v830, %v904
    %v906 = vpop.f32.mrf.mxu0
    %907 = vdwg.mxu0
    %908 = vmatprep.subr.mxu0 0.0
    %909 = vmatpush1.msra.mxu0 0.0
    %910 = vmatprep.subr.mxu0 0.0
    %911 = vmatpush1.msra.mxu0 0.0
    %912 = vmatprep.subr.mxu0 0.0
    %913 = vmatpush1.msra.mxu0 0.0
    %914 = vmatprep.subr.mxu0 0.0
    %915 = vmatpush1.msra.mxu0 0.0
    %916 = vmatprep.subr.mxu0 0.0
    %917 = vmatpush1.msra.mxu0 0.0
    %918 = vmatprep.subr.mxu0 0.0
    %919 = vmatpush1.msra.mxu0 0.0
    %920 = vmatprep.subr.mxu0 0.0
    %921 = vmatpush1.msra.mxu0 0.0
    %922 = vmatprep.subr.mxu0 0.0
    %923 = vmatpush1.msra.mxu0 0.0
    %924 = vmatprep.subr.mxu0 0.0
    %925 = vmatpush1.msra.mxu0 0.0
    %926 = vmatprep.subr.mxu0 0.0
    %927 = vmatpush1.msra.mxu0 0.0
    %928 = vmatprep.subr.mxu0 0.0
    %929 = vmatpush1.msra.mxu0 0.0
    %930 = vmatprep.subr.mxu0 0.0
    %931 = vmatpush1.msra.mxu0 0.0
    %932 = vmatprep.subr.mxu0 0.0
    %933 = vmatpush1.msra.mxu0 0.0
    %934 = vmatprep.subr.mxu0 0.0
    %935 = vmatpush1.msra.mxu0 0.0
    %936 = vmatprep.subr.mxu0 0.0
    %v937 = vand.u32 %v584, 4294901760
    %v938 = vsub.f32 %v584, %v937
    %v939 = vand.u32 %v938, 4294901760
    %940 = vmatpush1.msra.mxu0 %v939
    %941 = vmatprep.subr.mxu0 0.0
    %v942 = vand.u32 %v583, 4294901760
    %v943 = vsub.f32 %v583, %v942
    %v944 = vand.u32 %v943, 4294901760
    %945 = vmatpush1.msra.mxu0 %v944
    %946 = vmatprep.subr.mxu0 0.0
    %947 = vmatpush2.msra.mxu0 0.0
    %948 = vmatprep.subr.mxu0 0.0
    %949 = vmatpush2.msra.mxu0 0.0
    %950 = vmatprep.subr.mxu0 0.0
    %951 = vmatpush2.msra.mxu0 0.0
    %952 = vmatprep.subr.mxu0 0.0
    %953 = vmatpush2.msra.mxu0 0.0
    %954 = vmatprep.subr.mxu0 0.0
    %955 = vmatpush2.msra.mxu0 0.0
    %956 = vmatprep.subr.mxu0 0.0
    %957 = vmatpush2.msra.mxu0 0.0
    %958 = vmatprep.subr.mxu0 0.0
    %959 = vmatpush2.msra.mxu0 0.0
    %960 = vmatprep.subr.mxu0 0.0
    %961 = vmatpush2.msra.mxu0 0.0
    %962 = vmatprep.subr.mxu0 0.0
    %963 = vmatpush2.msra.mxu0 0.0
    %964 = vmatprep.subr.mxu0 0.0
    %965 = vmatpush2.msra.mxu0 0.0
    %966 = vmatprep.subr.mxu0 0.0
    %967 = vmatpush2.msra.mxu0 0.0
    %968 = vmatprep.subr.mxu0 0.0
    %969 = vmatpush2.msra.mxu0 0.0
    %970 = vmatprep.subr.mxu0 0.0
    %971 = vmatpush2.msra.mxu0 0.0
    %972 = vmatprep.subr.mxu0 0.0
    %973 = vmatpush2.msra.mxu0 0.0
    %974 = vmatprep.subr.mxu0 0.0
    %975 = vmatpush2.msra.mxu0 0.0
    %976 = vmatprep.subr.mxu0 0.0
    %977 = vmatpush2.msra.mxu0 0.0
    %978 = vmatprep.mubr.f32.mxu0 0.0
    %v979 = vand.u32 %v597, 4294901760
    %980 = vmatmul.mubr.f32.gmra.mxu0 %v979
    %v981 = vpop.f32.mrf.mxu0
    %v982 = vadd.f32 %v905, %v981
    %v983 = vpop.f32.mrf.mxu0
    %984 = vdwg.mxu0
    %985 = vmatprep.subr.mxu0 0.0
    %986 = vmatpush1.msra.mxu0 0.0
    %987 = vmatprep.subr.mxu0 0.0
    %988 = vmatpush1.msra.mxu0 0.0
    %989 = vmatprep.subr.mxu0 0.0
    %990 = vmatpush1.msra.mxu0 0.0
    %991 = vmatprep.subr.mxu0 0.0
    %992 = vmatpush1.msra.mxu0 0.0
    %993 = vmatprep.subr.mxu0 0.0
    %994 = vmatpush1.msra.mxu0 0.0
    %995 = vmatprep.subr.mxu0 0.0
    %996 = vmatpush1.msra.mxu0 0.0
    %997 = vmatprep.subr.mxu0 0.0
    %998 = vmatpush1.msra.mxu0 0.0
    %999 = vmatprep.subr.mxu0 0.0
    %1000 = vmatpush1.msra.mxu0 0.0
    %1001 = vmatprep.subr.mxu0 0.0
    %1002 = vmatpush1.msra.mxu0 0.0
    %1003 = vmatprep.subr.mxu0 0.0
    %1004 = vmatpush1.msra.mxu0 0.0
    %1005 = vmatprep.subr.mxu0 0.0
    %1006 = vmatpush1.msra.mxu0 0.0
    %1007 = vmatprep.subr.mxu0 0.0
    %1008 = vmatpush1.msra.mxu0 0.0
    %1009 = vmatprep.subr.mxu0 0.0
    %1010 = vmatpush1.msra.mxu0 0.0
    %1011 = vmatprep.subr.mxu0 0.0
    %1012 = vmatpush1.msra.mxu0 0.0
    %1013 = vmatprep.subr.mxu0 0.0
    %v1014 = vand.u32 %v584, 4294901760
    %1015 = vmatpush1.msra.mxu0 %v1014
    %1016 = vmatprep.subr.mxu0 0.0
    %v1017 = vand.u32 %v583, 4294901760
    %1018 = vmatpush1.msra.mxu0 %v1017
    %1019 = vmatprep.subr.mxu0 0.0
    %1020 = vmatpush2.msra.mxu0 0.0
    %1021 = vmatprep.subr.mxu0 0.0
    %1022 = vmatpush2.msra.mxu0 0.0
    %1023 = vmatprep.subr.mxu0 0.0
    %1024 = vmatpush2.msra.mxu0 0.0
    %1025 = vmatprep.subr.mxu0 0.0
    %1026 = vmatpush2.msra.mxu0 0.0
    %1027 = vmatprep.subr.mxu0 0.0
    %1028 = vmatpush2.msra.mxu0 0.0
    %1029 = vmatprep.subr.mxu0 0.0
    %1030 = vmatpush2.msra.mxu0 0.0
    %1031 = vmatprep.subr.mxu0 0.0
    %1032 = vmatpush2.msra.mxu0 0.0
    %1033 = vmatprep.subr.mxu0 0.0
    %1034 = vmatpush2.msra.mxu0 0.0
    %1035 = vmatprep.subr.mxu0 0.0
    %1036 = vmatpush2.msra.mxu0 0.0
    %1037 = vmatprep.subr.mxu0 0.0
    %1038 = vmatpush2.msra.mxu0 0.0
    %1039 = vmatprep.subr.mxu0 0.0
    %1040 = vmatpush2.msra.mxu0 0.0
    %1041 = vmatprep.subr.mxu0 0.0
    %1042 = vmatpush2.msra.mxu0 0.0
    %1043 = vmatprep.subr.mxu0 0.0
    %1044 = vmatpush2.msra.mxu0 0.0
    %1045 = vmatprep.subr.mxu0 0.0
    %1046 = vmatpush2.msra.mxu0 0.0
    %1047 = vmatprep.subr.mxu0 0.0
    %1048 = vmatpush2.msra.mxu0 0.0
    %1049 = vmatprep.subr.mxu0 0.0
    %1050 = vmatpush2.msra.mxu0 0.0
    %1051 = vmatprep.mubr.f32.mxu0 0.0
    %v1052 = vand.u32 %v597, 4294901760
    %1053 = vmatmul.mubr.f32.gmra.mxu0 %v1052
    %v1054 = vpop.f32.mrf.mxu0
    %v1055 = vadd.f32 %v982, %v1054
    %v1056 = vpop.f32.mrf.mxu0
    %1057 = vdwg.mxu0
    %v1058 = vmul.f32 %v1055, 2.0
    %v1059 = vsub.f32 %v593, %v1058
    %v1060 = vld [vmem:[%s6] sm:$0x3]
    %1062 = vset.pattern.permute.xlu0 0
    %1063 = vperm.xlu0 %1062, %v1060
    %v1064 = vpop.permute.xlu0 %1063
    %v1066 = vadd.f32 %v1059, %v1064
    %v1067 = vmax.f32 %v1066, 0.0
    %v1068 = vsub.f32 0.0, %v1067
    %v1069 = vld [vmem:[%s7] sm:$0x3]
    %1071 = vset.pattern.permute.xlu0 0
    %1072 = vperm.xlu0 %1071, %v1069
    %v1073 = vpop.permute.xlu0 %1072
    %v1075 = vmul.f32 %v1068, %v1073
    %v1076 = vmul.f32 %v1075, 1.442695
    %v1077 = vpow.pop %v1076
    %1078 = vst [vmem:[#allocation2] sm:$0x3] %v1077
    // Predicated region
    $region34: #{tpu_custom_call.1} parent=1 // pred_check
      _
    $region35: #{tpu_custom_call.1} parent=1 // pred_check_branch
      %1080 = sbr.rel (0) target = $region37
    $region36: #{tpu_custom_call.1} parent=1 // pred_region
      %s1082 = ssub.s32 32, 32
      %1083 = vsyncadd [#allocation3], %s1082
      %s1085 = sshll.u32 [#allocation2], 4
      %s1086 = int_to_ptr.vmem [resolvable:$true] %s1085
      %1088 = dma.vmem_to_hbm [thread:$0]  %s1086, 32, %s8, [#allocation3]
    $region37: #{tpu_custom_call.1} parent=1 // pred_fallthru
      _
    // Predicated region
    $region38: #{tpu_custom_call.1} parent=1 // pred_check
      _
    $region39: #{tpu_custom_call.1} parent=1 // pred_check_branch
      %1090 = sbr.rel (0) target = $region41
    $region40: #{tpu_custom_call.1} parent=1 // pred_region
      %1091 = dma.done [#allocation3], 32
    $region41: #{tpu_custom_call.1} parent=1 // pred_fallthru
      _
    %1092 = vsyncpa [#allocation3], 1

</llo_original>
